<compile_context>
chip_gen: v7x
topology: tpu7x:2x2x1
jax: 0.10.0
libtpu: 0.0.40
codegen_flags: <defaults>
</compile_context>

<pallas_src>
import math

import jax
import jax.numpy as jnp
from jax.experimental import pallas as pl
from jax.experimental.pallas import tpu as pltpu

EMB = 64          # emb_size
WIN = 50          # window_size
IN_CH = 1         # in_channels
NEG_SLOPE = 0.01  # nn.LeakyReLU default
BN_EPS = 1e-5     # nn.BatchNorm1d default
C24 = (EMB - EMB // 4) // 2   # 24

# ---- constants-slab row layout --------------------------------------------
_RA, _RB, _RC, _RD, _RV = 0, 128, 256, 384, 512   # WA, WB, WC, WD, vec-rows
_NVROWS = 13
_NROWS = _RV + _NVROWS                             # 525
# vec-row indices inside the V block
_BA, _BB, _MB, _SB, _TB, _BC, _MC, _SC, _TC, _BD, _SD, _TD, _CLS = range(_NVROWS)


# ----------------------------------------------------------------------------
# Fused Pallas kernel: whole forward on VMEM-resident values, 4 matmuls total
# ----------------------------------------------------------------------------
def fused_window_embedding_kernel(act_ref, const_ref, o_ref):
    # act_ref:   (NP, 128)  lanes [0:50]=window, [50]=cls flag, [64:128]=pe row
    # const_ref: (525, 128) packed weights + vec rows (see fold_params)
    # o_ref:     (NP, 64)
    a = act_ref[...]
    V = const_ref[_RV:_RV + _NVROWS, :]            # (13, 128) packed vectors

    def leaky(v):
        return jnp.where(v > 0, v, NEG_SLOPE * v)

    def mm(lhs, rhs):
        return jnp.dot(lhs, rhs, preferred_element_type=jnp.float32)

    def row(i, w=128):
        return V[i:i + 1, 0:w]                     # (1, w)

    # stage A: the three conv stages that consume x, fused into ONE matmul.
    # WA rows >= 50 are zero, so the flag / pe lanes of `a` contribute nothing.
    u = leaky(mm(a, const_ref[_RA:_RA + 128, :]) + row(_BA))          # (NP,128)
    # u lanes: [y1_leaky(16) | a2(80) | a3(32)]

    # stage B: [diag(s1)·y1 + t1  (BN1 carry) | conv2b | conv3b]
    v = mm(u, const_ref[_RB:_RB + 128, :]) + row(_BB)                 # (NP,128)
    mB = jnp.broadcast_to(row(_MB), v.shape)       # leaky only on lanes 16..71
    v = jnp.where(mB > 0.5, leaky(v), v) * row(_SB) + row(_TB)
    # v lanes: [y1(16) | z2(32) | y3(24) | 0(56)]

    # stage C: [I-carry y1 | conv2c (+BN2) | I-carry y3]
    p = mm(v, const_ref[_RC:_RC + 128, :]) + row(_BC)                 # (NP,128)
    mC = jnp.broadcast_to(row(_MC), p.shape)       # leaky only on lanes 16..39
    q = jnp.where(mC > 0.5, leaky(p), p) * row(_SC) + row(_TC)
    # q lanes: [y1(16) | y2(24) | y3(24) | 0(64)]  == torch.cat([x1,x2,x3])

    # stage D: 1x1 projection_4 + BN4 + positional encoding
    r = mm(q, const_ref[_RD:_RD + 128, :])[:, 0:EMB] + row(_BD, EMB)  # (NP,64)
    y4 = leaky(r) * row(_SD, EMB) + row(_TD, EMB) + a[:, 64:64 + EMB]

    # cls-token rows (flag lane): cls_token + pe[0]
    flag = jnp.broadcast_to(a[:, 50:51], y4.shape)
    cls = jnp.broadcast_to(row(_CLS, EMB), y4.shape)
    o_ref[...] = jnp.where(flag > 0.5, cls, y4)


# ----------------------------------------------------------------------------
# One-time weight folding (cached outside the per-call path)
# ----------------------------------------------------------------------------
def bn_affine(bn):
    gamma, beta, mean, var = bn
    s = gamma / jnp.sqrt(var + BN_EPS)
    return s, beta - mean * s                      # (c,), (c,)


def positional_encoding(max_len, d_model):
    pos = jnp.arange(max_len, dtype=jnp.float32)[:, None]
    div = jnp.exp(jnp.arange(0, d_model, 2, dtype=jnp.float32)
                  * (-math.log(10000.0) / d_model))
    pe = jnp.zeros((max_len, d_model), jnp.float32)
    pe = pe.at[:, 0::2].set(jnp.sin(pos * div))
    pe = pe.at[:, 1::2].set(jnp.cos(pos * div))
    return pe


def block_diag_tiles(block, n):
    r, c = block.shape
    out = jnp.zeros((n * r, n * c), block.dtype)
    for i in range(n):
        out = out.at[i * r:(i + 1) * r, i * c:(i + 1) * c].set(block)
    return out


def fold_params(params):
    """Fold all convs (stride==kernel -> dense matmuls), BN affines, biases,
    activation masks and the cls row into ONE (525,128) f32 constants slab.
    Call once per parameter set; reuse the result for every forward."""
    f32 = jnp.float32
    s1, t1 = bn_affine(params["bn1"])
    s2, t2 = bn_affine(params["bn2"])
    s3, t3 = bn_affine(params["bn3"])
    s4, t4 = bn_affine(params["bn4"])

    w1, b1 = params["c1"]
    w1m = w1.reshape(EMB // 4, WIN).T                                          # (50,16)
    w2a, b2a = params["c2a"]
    w2a_blk = block_diag_tiles(w2a.reshape(EMB // 8, 5).T, WIN // 5)           # (50,80)
    w2b, b2b = params["c2b"]
    w2b_blk = block_diag_tiles(
        w2b.transpose(2, 1, 0).reshape(5 * (EMB // 8), EMB // 4), 2)           # (80,32)
    w2c, b2c = params["c2c"]
    w2cm = w2c.transpose(2, 1, 0).reshape(2 * (EMB // 4), C24)                 # (32,24)
    w3a, b3a = params["c3a"]
    w3a_blk = block_diag_tiles(w3a.reshape(EMB // 4, 25).T, 2)                 # (50,32)
    w3b, b3b = params["c3b"]
    w3bm = w3b.transpose(2, 1, 0).reshape(2 * (EMB // 4), C24)                 # (32,24)
    w4, b4 = params["c4"]
    w4m = w4.reshape(EMB, EMB).T                                               # (64,64)

    # stage-A weight: x -> [y1_pre | a2 | a3]
    WA = jnp.zeros((128, 128), f32)
    WA = (WA.at[0:50, 0:16].set(w1m)
            .at[0:50, 16:96].set(w2a_blk)
            .at[0:50, 96:128].set(w3a_blk))
    # stage-B weight: [BN1 carry (diag s1) | conv2b | conv3b]
    WB = jnp.zeros((128, 128), f32)
    WB = (WB.at[0:16, 0:16].set(jnp.diag(s1))
            .at[16:96, 16:48].set(w2b_blk)
            .at[96:128, 48:72].set(w3bm))
    # stage-C weight: [I-carry y1 | conv2c | I-carry y3]
    WC = jnp.zeros((128, 128), f32)
    WC = (WC.at[0:16, 0:16].set(jnp.eye(16, dtype=f32))
            .at[16:48, 16:40].set(w2cm)
            .at[48:72, 40:64].set(jnp.eye(24, dtype=f32)))
    # stage-D weight: the original 1x1 projection (concat order y1|y2|y3)
    WD = jnp.zeros((128, 128), f32)
    WD = WD.at[0:64, 0:64].set(w4m)

    z = lambda n: jnp.zeros((n,), f32)
    o = lambda n: jnp.ones((n,), f32)
    cat = lambda *xs: jnp.concatenate([jnp.asarray(e, f32).reshape(-1) for e in xs])

    pe0 = positional_encoding(1, EMB)[0]
    V = jnp.stack([
        cat(b1, jnp.tile(b2a, WIN // 5), jnp.tile(b3a, 2)),      # bA
        cat(t1, jnp.tile(b2b, 2), b3b, z(56)),                   # bB
        cat(z(16), o(56), z(56)),                                # maskB: leaky lanes 16..71
        cat(o(48), s3, o(56)),                                   # scaleB: BN3 scale
        cat(z(48), t3, z(56)),                                   # shiftB: BN3 shift
        cat(z(16), b2c, z(88)),                                  # bC
        cat(z(16), o(24), z(88)),                                # maskC: leaky lanes 16..39
        cat(o(16), s2, o(88)),                                   # scaleC: BN2 scale
        cat(z(16), t2, z(88)),                                   # shiftC: BN2 shift
        cat(b4, z(64)),                                          # bD
        cat(s4, z(64)),                                          # scaleD: BN4 scale
        cat(t4, z(64)),                                          # shiftD: BN4 shift
        cat(params["cls_token"][0, 0] + pe0, z(64)),             # cls_token + pe[0]
    ])                                                           # (13,128)

    const = jnp.concatenate([WA, WB, WC, WD, V], axis=0)         # (525,128)
    assert const.shape == (_NROWS, 128)
    return const


# ----------------------------------------------------------------------------
# Forward pass (mirrors Window_Embedding.forward, eval mode)
# ----------------------------------------------------------------------------
def window_embedding_forward(x, const_slab):
    b = x.shape[0]
    # torch: if x.shape[0] != 1: x = x.squeeze().unsqueeze(1) -> net effect (b,1,L)
    xf = x.reshape(b, -1).astype(jnp.float32)
    L = xf.shape[1]
    S = L // WIN            # stride==kernel Conv1d drops any trailing L % WIN samples
    SP1 = S + 1
    NP = b * SP1

    # window patches with one dummy (cls-position) row per batch
    xw = xf[:, :S * WIN].reshape(b, S, WIN)
    xpad = jnp.concatenate([jnp.zeros((b, 1, WIN), jnp.float32), xw],
                           axis=1).reshape(NP, WIN)
    flag = (jnp.arange(NP, dtype=jnp.int32) % SP1 == 0).astype(jnp.float32)[:, None]
    pe_rows = jnp.tile(positional_encoding(SP1, EMB), (b, 1))            # (NP,64)

    # single activation slab: [x(50) | cls-flag(1) | 0(13) | pe(64)]
    act = jnp.concatenate(
        [xpad, flag, jnp.zeros((NP, 128 - WIN - 1 - EMB), jnp.float32), pe_rows],
        axis=1)                                                          # (NP,128)

    vmem = pl.BlockSpec(memory_space=pltpu.MemorySpace.VMEM)
    cost = pl.CostEstimate(
        flops=2 * NP * 128 * 128 * 4,
        transcendentals=0,
        bytes_accessed=int(const_slab.size * 4 + act.size * 4 + NP * EMB * 4))

    out = pl.pallas_call(
        fused_window_embedding_kernel,
        out_shape=jax.ShapeDtypeStruct((NP, EMB), jnp.float32),
        in_specs=[vmem, vmem],
        out_specs=vmem,
        cost_estimate=cost,
    )(act, const_slab)
    return out.reshape(b, SP1, EMB)


# ----------------------------------------------------------------------------
# Pure-JAX reference (independent per-stage formulation) for correctness check
# ----------------------------------------------------------------------------
def reference_forward(x, params):
    b = x.shape[0]
    xf = x.reshape(b, -1).astype(jnp.float32)

    def conv_lrelu(inp_blc, w, bias):
        cout, cin, k = w.shape
        bb, lin, _ = inp_blc.shape
        lo = lin // k
        patches = inp_blc[:, :lo * k, :].reshape(bb, lo, k * cin)
        wm = w.transpose(2, 1, 0).reshape(k * cin, cout)
        y = jnp.einsum("blp,pc->blc", patches, wm,
                       precision=jax.lax.Precision.HIGHEST) + bias
        return jnp.where(y > 0, y, NEG_SLOPE * y)

    def bn(y, bnp):
        s, t = bn_affine(bnp)
        return y * s + t

    x_blc = xf[:, :, None]
    y1 = bn(conv_lrelu(x_blc, *params["c1"]), params["bn1"])
    u = conv_lrelu(x_blc, *params["c2a"])
    u = conv_lrelu(u, *params["c2b"])
    y2 = bn(conv_lrelu(u, *params["c2c"]), params["bn2"])
    v = conv_lrelu(x_blc, *params["c3a"])
    y3 = bn(conv_lrelu(v, *params["c3b"]), params["bn3"])
    xc = jnp.concatenate([y1, y2, y3], axis=-1)
    y4 = bn(conv_lrelu(xc, *params["c4"]), params["bn4"])                # (b,S,64)
    S = y4.shape[1]
    pe = positional_encoding(S + 1, EMB)
    cls = jnp.broadcast_to(params["cls_token"][0, 0], (b, 1, EMB))
    return jnp.concatenate([cls, y4], axis=1) + pe[None, :, :]


# ----------------------------------------------------------------------------
# Deterministic parameter init (shapes from Window_Embedding.__init__)
# ----------------------------------------------------------------------------
def init_conv(key, cin, cout, k):
    kw, kb = jax.random.split(key)
    bound = 1.0 / math.sqrt(cin * k)
    w = jax.random.uniform(kw, (cout, cin, k), jnp.float32, -bound, bound)
    bb = jax.random.uniform(kb, (cout,), jnp.float32, -bound, bound)
    return w, bb


def init_bn(key, c):
    kg, kb, km, kv = jax.random.split(key, 4)
    gamma = 1.0 + 0.1 * jax.random.normal(kg, (c,), jnp.float32)
    beta = 0.1 * jax.random.normal(kb, (c,), jnp.float32)
    mean = 0.1 * jax.random.normal(km, (c,), jnp.float32)
    var = jnp.abs(jax.random.normal(kv, (c,), jnp.float32)) + 0.5
    return gamma, beta, mean, var


def init_params(key):
    e = EMB
    ks = jax.random.split(key, 12)
    p = {}
    p["c1"] = init_conv(ks[0], IN_CH, e // 4, WIN)
    p["bn1"] = init_bn(ks[1], e // 4)
    p["c2a"] = init_conv(ks[2], IN_CH, e // 8, 5)
    p["c2b"] = init_conv(ks[3], e // 8, e // 4, 5)
    p["c2c"] = init_conv(ks[4], e // 4, C24, 2)
    p["bn2"] = init_bn(ks[5], C24)
    p["c3a"] = init_conv(ks[6], IN_CH, e // 4, 25)
    p["c3b"] = init_conv(ks[7], e // 4, C24, 2)
    p["bn3"] = init_bn(ks[8], C24)
    p["c4"] = init_conv(ks[9], e, e, 1)
    p["bn4"] = init_bn(ks[10], e)
    p["cls_token"] = jax.random.normal(ks[11], (1, 1, e), jnp.float32)
    return p


if __name__ == "__main__":
    key = jax.random.PRNGKey(0)
    kp, kx = jax.random.split(key)
    params = init_params(kp)

    # Fold weights ONCE; the per-inference path sees only the prebuilt slab.
    const_slab = jax.block_until_ready(fold_params(params))

    B, L = 2, 200                                    # S = L / window_size = 4
    x = jax.random.normal(kx, (B, 1, L), jnp.float32)

    fwd = jax.jit(window_embedding_forward)
    out = jax.block_until_ready(fwd(x, const_slab))

    assert out.shape == (B, L // WIN + 1, EMB), out.shape
    assert bool(jnp.all(jnp.isfinite(out)))

    ref = jax.block_until_ready(reference_forward(x, params))
    max_err = float(jnp.max(jnp.abs(out - ref)))
    assert jnp.allclose(out, ref, atol=5e-2, rtol=5e-2), max_err

    print("KERNEL_OK")
</pallas_src>

<mosaic_0001>
module attributes {stable_mosaic.version = 11 : i64} {
  func.func @fused_window_embedding_kernel(%arg0: memref<10x128xf32, #tpu.memory_space<vmem>>, %arg1: memref<525x128xf32, #tpu.memory_space<vmem>>, %arg2: memref<10x64xf32, #tpu.memory_space<vmem>>) attributes {dimension_semantics = [], scalar_prefetch = 0 : i64, scratch_operands = 0 : i64, tpu.core_type = #tpu.core_type<tc>} {
    %c0 = arith.constant 0 : index
    %c0_0 = arith.constant 0 : index
    %0 = vector.load %arg0[%c0, %c0_0] : memref<10x128xf32, #tpu.memory_space<vmem>>, vector<10x128xf32>
    %c512 = arith.constant 512 : index
    %c0_1 = arith.constant 0 : index
    %1 = vector.load %arg1[%c512, %c0_1] : memref<525x128xf32, #tpu.memory_space<vmem>>, vector<13x128xf32>
    %c0_2 = arith.constant 0 : index
    %c0_3 = arith.constant 0 : index
    %2 = vector.load %arg1[%c0_2, %c0_3] : memref<525x128xf32, #tpu.memory_space<vmem>>, vector<128x128xf32>
    %cst = arith.constant dense<0.000000e+00> : vector<10x128xf32>
    %3 = tpu.matmul %0, %2, %cst {dimension_numbers = #tpu.dot_dimension_numbers<[1], [0], [0], [1], [0, 0, 1, 1], [], []>} : vector<10x128xf32>, vector<128x128xf32>, vector<10x128xf32> -> vector<10x128xf32>
    %4 = vector.extract_strided_slice %1 {offsets = [0, 0], sizes = [1, 128], strides = [1, 1]} : vector<13x128xf32> to vector<1x128xf32>
    %5 = vector.broadcast %4 : vector<1x128xf32> to vector<10x128xf32>
    %6 = arith.addf %3, %5 : vector<10x128xf32>
    %cst_4 = arith.constant 0.000000e+00 : f32
    %7 = vector.broadcast %cst_4 : f32 to vector<10x128xf32>
    %8 = arith.cmpf ogt, %6, %7 : vector<10x128xf32>
    %cst_5 = arith.constant 0.00999999977 : f32
    %9 = vector.broadcast %cst_5 : f32 to vector<10x128xf32>
    %10 = arith.mulf %9, %6 : vector<10x128xf32>
    %11 = arith.select %8, %6, %10 : vector<10x128xi1>, vector<10x128xf32>
    %c128 = arith.constant 128 : index
    %c0_6 = arith.constant 0 : index
    %12 = vector.load %arg1[%c128, %c0_6] : memref<525x128xf32, #tpu.memory_space<vmem>>, vector<128x128xf32>
    %cst_7 = arith.constant dense<0.000000e+00> : vector<10x128xf32>
    %13 = tpu.matmul %11, %12, %cst_7 {dimension_numbers = #tpu.dot_dimension_numbers<[1], [0], [0], [1], [0, 0, 1, 1], [], []>} : vector<10x128xf32>, vector<128x128xf32>, vector<10x128xf32> -> vector<10x128xf32>
    %14 = vector.extract_strided_slice %1 {offsets = [1, 0], sizes = [1, 128], strides = [1, 1]} : vector<13x128xf32> to vector<1x128xf32>
    %15 = vector.broadcast %14 : vector<1x128xf32> to vector<10x128xf32>
    %16 = arith.addf %13, %15 : vector<10x128xf32>
    %17 = vector.extract_strided_slice %1 {offsets = [2, 0], sizes = [1, 128], strides = [1, 1]} : vector<13x128xf32> to vector<1x128xf32>
    %18 = vector.shape_cast %17 : vector<1x128xf32> to vector<1x128xf32>
    %19 = vector.broadcast %18 : vector<1x128xf32> to vector<10x128xf32>
    %cst_8 = arith.constant 5.000000e-01 : f32
    %20 = vector.broadcast %cst_8 : f32 to vector<10x128xf32>
    %21 = arith.cmpf ogt, %19, %20 : vector<10x128xf32>
    %cst_9 = arith.constant 0.000000e+00 : f32
    %22 = vector.broadcast %cst_9 : f32 to vector<10x128xf32>
    %23 = arith.cmpf ogt, %16, %22 : vector<10x128xf32>
    %cst_10 = arith.constant 0.00999999977 : f32
    %24 = vector.broadcast %cst_10 : f32 to vector<10x128xf32>
    %25 = arith.mulf %24, %16 : vector<10x128xf32>
    %26 = arith.select %23, %16, %25 : vector<10x128xi1>, vector<10x128xf32>
    %27 = arith.select %21, %26, %16 : vector<10x128xi1>, vector<10x128xf32>
    %28 = vector.extract_strided_slice %1 {offsets = [3, 0], sizes = [1, 128], strides = [1, 1]} : vector<13x128xf32> to vector<1x128xf32>
    %29 = vector.broadcast %28 : vector<1x128xf32> to vector<10x128xf32>
    %30 = arith.mulf %27, %29 : vector<10x128xf32>
    %31 = vector.extract_strided_slice %1 {offsets = [4, 0], sizes = [1, 128], strides = [1, 1]} : vector<13x128xf32> to vector<1x128xf32>
    %32 = vector.broadcast %31 : vector<1x128xf32> to vector<10x128xf32>
    %33 = arith.addf %30, %32 : vector<10x128xf32>
    %c256 = arith.constant 256 : index
    %c0_11 = arith.constant 0 : index
    %34 = vector.load %arg1[%c256, %c0_11] : memref<525x128xf32, #tpu.memory_space<vmem>>, vector<128x128xf32>
    %cst_12 = arith.constant dense<0.000000e+00> : vector<10x128xf32>
    %35 = tpu.matmul %33, %34, %cst_12 {dimension_numbers = #tpu.dot_dimension_numbers<[1], [0], [0], [1], [0, 0, 1, 1], [], []>} : vector<10x128xf32>, vector<128x128xf32>, vector<10x128xf32> -> vector<10x128xf32>
    %36 = vector.extract_strided_slice %1 {offsets = [5, 0], sizes = [1, 128], strides = [1, 1]} : vector<13x128xf32> to vector<1x128xf32>
    %37 = vector.broadcast %36 : vector<1x128xf32> to vector<10x128xf32>
    %38 = arith.addf %35, %37 : vector<10x128xf32>
    %39 = vector.extract_strided_slice %1 {offsets = [6, 0], sizes = [1, 128], strides = [1, 1]} : vector<13x128xf32> to vector<1x128xf32>
    %40 = vector.shape_cast %39 : vector<1x128xf32> to vector<1x128xf32>
    %41 = vector.broadcast %40 : vector<1x128xf32> to vector<10x128xf32>
    %cst_13 = arith.constant 5.000000e-01 : f32
    %42 = vector.broadcast %cst_13 : f32 to vector<10x128xf32>
    %43 = arith.cmpf ogt, %41, %42 : vector<10x128xf32>
    %cst_14 = arith.constant 0.000000e+00 : f32
    %44 = vector.broadcast %cst_14 : f32 to vector<10x128xf32>
    %45 = arith.cmpf ogt, %38, %44 : vector<10x128xf32>
    %cst_15 = arith.constant 0.00999999977 : f32
    %46 = vector.broadcast %cst_15 : f32 to vector<10x128xf32>
    %47 = arith.mulf %46, %38 : vector<10x128xf32>
    %48 = arith.select %45, %38, %47 : vector<10x128xi1>, vector<10x128xf32>
    %49 = arith.select %43, %48, %38 : vector<10x128xi1>, vector<10x128xf32>
    %50 = vector.extract_strided_slice %1 {offsets = [7, 0], sizes = [1, 128], strides = [1, 1]} : vector<13x128xf32> to vector<1x128xf32>
    %51 = vector.broadcast %50 : vector<1x128xf32> to vector<10x128xf32>
    %52 = arith.mulf %49, %51 : vector<10x128xf32>
    %53 = vector.extract_strided_slice %1 {offsets = [8, 0], sizes = [1, 128], strides = [1, 1]} : vector<13x128xf32> to vector<1x128xf32>
    %54 = vector.broadcast %53 : vector<1x128xf32> to vector<10x128xf32>
    %55 = arith.addf %52, %54 : vector<10x128xf32>
    %c384 = arith.constant 384 : index
    %c0_16 = arith.constant 0 : index
    %56 = vector.load %arg1[%c384, %c0_16] : memref<525x128xf32, #tpu.memory_space<vmem>>, vector<128x128xf32>
    %cst_17 = arith.constant dense<0.000000e+00> : vector<10x128xf32>
    %57 = tpu.matmul %55, %56, %cst_17 {dimension_numbers = #tpu.dot_dimension_numbers<[1], [0], [0], [1], [0, 0, 1, 1], [], []>} : vector<10x128xf32>, vector<128x128xf32>, vector<10x128xf32> -> vector<10x128xf32>
    %58 = vector.extract_strided_slice %57 {offsets = [0, 0], sizes = [10, 64], strides = [1, 1]} : vector<10x128xf32> to vector<10x64xf32>
    %59 = vector.extract_strided_slice %1 {offsets = [9, 0], sizes = [1, 64], strides = [1, 1]} : vector<13x128xf32> to vector<1x64xf32>
    %60 = vector.broadcast %59 : vector<1x64xf32> to vector<10x64xf32>
    %61 = arith.addf %58, %60 : vector<10x64xf32>
    %cst_18 = arith.constant 0.000000e+00 : f32
    %62 = vector.broadcast %cst_18 : f32 to vector<10x64xf32>
    %63 = arith.cmpf ogt, %61, %62 : vector<10x64xf32>
    %cst_19 = arith.constant 0.00999999977 : f32
    %64 = vector.broadcast %cst_19 : f32 to vector<10x64xf32>
    %65 = arith.mulf %64, %61 : vector<10x64xf32>
    %66 = arith.select %63, %61, %65 : vector<10x64xi1>, vector<10x64xf32>
    %67 = vector.extract_strided_slice %1 {offsets = [10, 0], sizes = [1, 64], strides = [1, 1]} : vector<13x128xf32> to vector<1x64xf32>
    %68 = vector.broadcast %67 : vector<1x64xf32> to vector<10x64xf32>
    %69 = arith.mulf %66, %68 : vector<10x64xf32>
    %70 = vector.extract_strided_slice %1 {offsets = [11, 0], sizes = [1, 64], strides = [1, 1]} : vector<13x128xf32> to vector<1x64xf32>
    %71 = vector.broadcast %70 : vector<1x64xf32> to vector<10x64xf32>
    %72 = arith.addf %69, %71 : vector<10x64xf32>
    %73 = vector.extract_strided_slice %0 {offsets = [0, 64], sizes = [10, 64], strides = [1, 1]} : vector<10x128xf32> to vector<10x64xf32>
    %74 = arith.addf %72, %73 : vector<10x64xf32>
    %75 = vector.extract_strided_slice %0 {offsets = [0, 50], sizes = [10, 1], strides = [1, 1]} : vector<10x128xf32> to vector<10x1xf32>
    %76 = vector.shape_cast %75 : vector<10x1xf32> to vector<10x1xf32>
    %77 = vector.broadcast %76 : vector<10x1xf32> to vector<10x64xf32>
    %78 = vector.extract_strided_slice %1 {offsets = [12, 0], sizes = [1, 64], strides = [1, 1]} : vector<13x128xf32> to vector<1x64xf32>
    %79 = vector.shape_cast %78 : vector<1x64xf32> to vector<1x64xf32>
    %80 = vector.broadcast %79 : vector<1x64xf32> to vector<10x64xf32>
    %cst_20 = arith.constant 5.000000e-01 : f32
    %81 = vector.broadcast %cst_20 : f32 to vector<10x64xf32>
    %82 = arith.cmpf ogt, %77, %81 : vector<10x64xf32>
    %83 = arith.select %82, %80, %74 : vector<10x64xi1>, vector<10x64xf32>
    %c0_21 = arith.constant 0 : index
    %c0_22 = arith.constant 0 : index
    %84 = vector.load %arg2[%c0_21, %c0_22] : memref<10x64xf32, #tpu.memory_space<vmem>>, vector<10x64xf32>
    tpu.vector_store %arg2[%c0_21, %c0_22], %83 {strides = array<i32>} : memref<10x64xf32, #tpu.memory_space<vmem>>, vector<10x64xf32>,
    return
  }
}

</mosaic_0001>

<llo_original>
// kernel: tile.9
$region0: #{tile.9}
  %s0 = inlined_call_operand.vmem [shape: f32[2,5,64], index: 0, kind: input, shape index: {}]
  %s1 = inlined_call_operand.vmem [shape: f32[10,64], index: 1, kind: output, shape index: {}]
  %v2 = vld [vmem:[%s0] sm:$0x1f]
  %vm3 = vcmask 523264
  %4 = vst.msk [vmem:[%s1] sm:$0x1f] %vm3, %v2
  %s5 = scalar_lea.vmem %s0, 8
  %v6 = vld [vmem:[%s5] sm:$0x1f]
  %vm7 = vcmask 523264
  %s8 = scalar_lea.vmem %s1, 5
  %9 = vst.msk [vmem:[%s8] sm:$0x1f] %vm7, %v6

// kernel: window_embedding_forward.1
$region0: #{window_embedding_forward.1}
  #allocation0 [shape = 'u32[]', space=smem, size = 0x4, offset = 0x4, fixed_abs, tag = 'smem constant byte address 0x4 - core index']
  #allocation1 [shape = 'u32[144,128]{1,0:T(1,128)}', space=vmem, size = 0x12000, scoped, tag = 'internal scratch']
  %s0 = inlined_call_operand.vmem [shape: f32[10,128], index: 0, kind: input, shape index: {}]
  %s1 = inlined_call_operand.hbm [shape: f32[525,128], index: 1, kind: input, shape index: {}]
  %s2 = inlined_call_operand.vmem [shape: f32[10,64], index: 2, kind: output, shape index: {}]
  %s3 = sld [smem:[#allocation0]]
  $region22: #{window_embedding_forward.1} parent=0
    _
  %s5 = ssub.s32 1, %s3
  %s6 = scalar_select 0, %s5, %s3
  $region1: #{window_embedding_forward.1} parent=0
    #allocation2 [shape = 'u8[270336]{0}', space=vmem, size = 0x42000, scoped, tag = 'input window, operand 1, single buffered']
    #allocation3 [shape = 's32[1]{0}', space=sflag, size = 0x4, scoped, tag = 'scoped memory for window_embedding_forward.1']
    %7 = vsyncpa [#allocation3], 0
    // Predicated region
    $region2: #{window_embedding_forward.1} parent=1 // pred_check
      _
    $region3: #{window_embedding_forward.1} parent=1 // pred_check_branch
      %9 = sbr.rel (0) target = $region5
    $region4: #{window_embedding_forward.1} parent=1 // pred_region
      _
    $region5: #{window_embedding_forward.1} parent=1 // pred_fallthru
      _
    // Predicated region
    $region6: #{window_embedding_forward.1} parent=1 // pred_check
      _
    $region7: #{window_embedding_forward.1} parent=1 // pred_check_branch
      %11 = sbr.rel (0) target = $region9
    $region8: #{window_embedding_forward.1} parent=1 // pred_region
      %s13 = ssub.s32 8448, 8448
      %14 = vsyncadd [#allocation3], %s13
      %s15 = sshll.u32 [#allocation2], 4
      %s16 = int_to_ptr.vmem [resolvable:$true] %s15
      %21 = dma.hbm_to_vmem [thread:$0]  %s1, 8448, %s16, [#allocation3], 128, 128, 8
    $region9: #{window_embedding_forward.1} parent=1 // pred_fallthru
      _
    // Predicated region
    $region10: #{window_embedding_forward.1} parent=1 // pred_check
      _
    $region11: #{window_embedding_forward.1} parent=1 // pred_check_branch
      %23 = sbr.rel (0) target = $region13
    $region12: #{window_embedding_forward.1} parent=1 // pred_region
      %24 = dma.done [#allocation3], 8448
    $region13: #{window_embedding_forward.1} parent=1 // pred_fallthru
      _
    %v25 = vld [vmem:[%s0] sm:$0xff]
    %v26 = vld [vmem:[%s0 + $0x8] sm:$0x3]
    %v27 = vld [vmem:[#allocation2 + $0x200] sm:$0xff]
    %v28 = vld [vmem:[#allocation2 + $0x208] sm:$0x1f]
    %v29 = vld [vmem:[#allocation2] sm:$0xff]
    %v30 = vld [vmem:[#allocation2 + $0x8] sm:$0xff]
    %v31 = vld [vmem:[#allocation2 + $0x10] sm:$0xff]
    %v32 = vld [vmem:[#allocation2 + $0x18] sm:$0xff]
    %v33 = vld [vmem:[#allocation2 + $0x20] sm:$0xff]
    %v34 = vld [vmem:[#allocation2 + $0x28] sm:$0xff]
    %v35 = vld [vmem:[#allocation2 + $0x30] sm:$0xff]
    %v36 = vld [vmem:[#allocation2 + $0x38] sm:$0xff]
    %v37 = vld [vmem:[#allocation2 + $0x40] sm:$0xff]
    %v38 = vld [vmem:[#allocation2 + $0x48] sm:$0xff]
    %v39 = vld [vmem:[#allocation2 + $0x50] sm:$0xff]
    %v40 = vld [vmem:[#allocation2 + $0x58] sm:$0xff]
    %v41 = vld [vmem:[#allocation2 + $0x60] sm:$0xff]
    %v42 = vld [vmem:[#allocation2 + $0x68] sm:$0xff]
    %v43 = vld [vmem:[#allocation2 + $0x70] sm:$0xff]
    %v44 = vld [vmem:[#allocation2 + $0x78] sm:$0xff]
    %v45 = vlaneseq
    %v46 = vshrl.u32 %v45, 7
    %v47 = vsub.s32 0, %v46
    %v48 = vrot.slane %v27, %v47
    %49 = vmatprep.subr.mxu0 0.0
    %50 = vmatpush1.msra.mxu0 %v29
    %51 = vmatprep.subr.mxu0 0.0
    %52 = vmatpush1.msra.mxu0 %v30
    %53 = vmatprep.subr.mxu0 0.0
    %54 = vmatpush1.msra.mxu0 %v31
    %55 = vmatprep.subr.mxu0 0.0
    %56 = vmatpush1.msra.mxu0 %v32
    %57 = vmatprep.subr.mxu0 0.0
    %58 = vmatpush1.msra.mxu0 %v33
    %59 = vmatprep.subr.mxu0 0.0
    %60 = vmatpush1.msra.mxu0 %v34
    %61 = vmatprep.subr.mxu0 0.0
    %62 = vmatpush1.msra.mxu0 %v35
    %63 = vmatprep.subr.mxu0 0.0
    %64 = vmatpush1.msra.mxu0 %v36
    %65 = vmatprep.subr.mxu0 0.0
    %66 = vmatpush1.msra.mxu0 %v37
    %67 = vmatprep.subr.mxu0 0.0
    %68 = vmatpush1.msra.mxu0 %v38
    %69 = vmatprep.subr.mxu0 0.0
    %70 = vmatpush1.msra.mxu0 %v39
    %71 = vmatprep.subr.mxu0 0.0
    %72 = vmatpush1.msra.mxu0 %v40
    %73 = vmatprep.subr.mxu0 0.0
    %74 = vmatpush1.msra.mxu0 %v41
    %75 = vmatprep.subr.mxu0 0.0
    %76 = vmatpush1.msra.mxu0 %v42
    %77 = vmatprep.subr.mxu0 0.0
    %78 = vmatpush1.msra.mxu0 %v43
    %79 = vmatprep.subr.mxu0 0.0
    %80 = vmatpush1.msra.mxu0 %v44
    %81 = vmatprep.subr.mxu0 0.0
    %82 = vmatpush1.msra.mxu0 0.0
    %83 = vmatprep.subr.mxu0 0.0
    %84 = vmatpush1.msra.mxu0 0.0
    %85 = vmatprep.subr.mxu0 0.0
    %86 = vmatpush1.msra.mxu0 0.0
    %87 = vmatprep.subr.mxu0 0.0
    %88 = vmatpush1.msra.mxu0 0.0
    %89 = vmatprep.subr.mxu0 0.0
    %90 = vmatpush1.msra.mxu0 0.0
    %91 = vmatprep.subr.mxu0 0.0
    %92 = vmatpush1.msra.mxu0 0.0
    %93 = vmatprep.subr.mxu0 0.0
    %94 = vmatpush1.msra.mxu0 0.0
    %95 = vmatprep.subr.mxu0 0.0
    %96 = vmatpush1.msra.mxu0 0.0
    %97 = vmatprep.subr.mxu0 0.0
    %98 = vmatpush1.msra.mxu0 0.0
    %99 = vmatprep.subr.mxu0 0.0
    %100 = vmatpush1.msra.mxu0 0.0
    %101 = vmatprep.subr.mxu0 0.0
    %102 = vmatpush1.msra.mxu0 0.0
    %103 = vmatprep.subr.mxu0 0.0
    %104 = vmatpush1.msra.mxu0 0.0
    %105 = vmatprep.subr.mxu0 0.0
    %106 = vmatpush1.msra.mxu0 0.0
    %107 = vmatprep.subr.mxu0 0.0
    %108 = vmatpush1.msra.mxu0 0.0
    %109 = vmatprep.subr.mxu0 0.0
    %110 = vmatpush1.msra.mxu0 0.0
    %111 = vmatprep.subr.mxu0 0.0
    %112 = vmatpush1.msra.mxu0 0.0
    %113 = vmatprep.mubr.f32.mxu0 0.0
    %114 = vmatmul.mubr.f32.gmra.mrb[0].mxu0 %v25
    %v115 = vpop.f32.mrb[0].mxu0
    %v116 = vadd.f32 %v48, %v115
    %v117 = vpop.f32.mrb[0].mxu0
    %118 = vmatprep.mubr.f32.mxu0 0.0
    %119 = vmatmul.mubr.f32.gmra.mrb[0].mxu0 %v26
    %v120 = vpop.f32.mrb[0].mxu0
    %v121 = vadd.f32 %v48, %v120
    %v122 = vpop.f32.mrb[0].mxu0
    %123 = vdwg.mxu0
    %vm124 = vcmp.gt.f32.partialorder %v116, 0.0
    %vm125 = vcmp.gt.f32.partialorder %v121, 0.0
    %v126 = vmul.f32 %v116, 0.01
    %v127 = vmul.f32 %v121, 0.01
    %v128 = vsel %vm124, %v116, %v126
    %v129 = vsel %vm125, %v121, %v127
    %v130 = vld [vmem:[#allocation2 + $0x80] sm:$0xff]
    %v131 = vld [vmem:[#allocation2 + $0x88] sm:$0xff]
    %v132 = vld [vmem:[#allocation2 + $0x90] sm:$0xff]
    %v133 = vld [vmem:[#allocation2 + $0x98] sm:$0xff]
    %v134 = vld [vmem:[#allocation2 + $0xa0] sm:$0xff]
    %v135 = vld [vmem:[#allocation2 + $0xa8] sm:$0xff]
    %v136 = vld [vmem:[#allocation2 + $0xb0] sm:$0xff]
    %v137 = vld [vmem:[#allocation2 + $0xb8] sm:$0xff]
    %v138 = vld [vmem:[#allocation2 + $0xc0] sm:$0xff]
    %v139 = vld [vmem:[#allocation2 + $0xc8] sm:$0xff]
    %v140 = vld [vmem:[#allocation2 + $0xd0] sm:$0xff]
    %v141 = vld [vmem:[#allocation2 + $0xd8] sm:$0xff]
    %v142 = vld [vmem:[#allocation2 + $0xe0] sm:$0xff]
    %v143 = vld [vmem:[#allocation2 + $0xe8] sm:$0xff]
    %v144 = vld [vmem:[#allocation2 + $0xf0] sm:$0xff]
    %v145 = vld [vmem:[#allocation2 + $0xf8] sm:$0xff]
    %v146 = vlaneseq
    %v147 = vshrl.u32 %v146, 7
    %v148 = vsub.s32 1, %v147
    %v149 = vrot.slane %v27, %v148
    %150 = vmatprep.subr.mxu0 0.0
    %151 = vmatpush1.msra.mxu0 %v130
    %152 = vmatprep.subr.mxu0 0.0
    %153 = vmatpush1.msra.mxu0 %v131
    %154 = vmatprep.subr.mxu0 0.0
    %155 = vmatpush1.msra.mxu0 %v132
    %156 = vmatprep.subr.mxu0 0.0
    %157 = vmatpush1.msra.mxu0 %v133
    %158 = vmatprep.subr.mxu0 0.0
    %159 = vmatpush1.msra.mxu0 %v134
    %160 = vmatprep.subr.mxu0 0.0
    %161 = vmatpush1.msra.mxu0 %v135
    %162 = vmatprep.subr.mxu0 0.0
    %163 = vmatpush1.msra.mxu0 %v136
    %164 = vmatprep.subr.mxu0 0.0
    %165 = vmatpush1.msra.mxu0 %v137
    %166 = vmatprep.subr.mxu0 0.0
    %167 = vmatpush1.msra.mxu0 %v138
    %168 = vmatprep.subr.mxu0 0.0
    %169 = vmatpush1.msra.mxu0 %v139
    %170 = vmatprep.subr.mxu0 0.0
    %171 = vmatpush1.msra.mxu0 %v140
    %172 = vmatprep.subr.mxu0 0.0
    %173 = vmatpush1.msra.mxu0 %v141
    %174 = vmatprep.subr.mxu0 0.0
    %175 = vmatpush1.msra.mxu0 %v142
    %176 = vmatprep.subr.mxu0 0.0
    %177 = vmatpush1.msra.mxu0 %v143
    %178 = vmatprep.subr.mxu0 0.0
    %179 = vmatpush1.msra.mxu0 %v144
    %180 = vmatprep.subr.mxu0 0.0
    %181 = vmatpush1.msra.mxu0 %v145
    %182 = vmatprep.subr.mxu0 0.0
    %183 = vmatpush1.msra.mxu0 0.0
    %184 = vmatprep.subr.mxu0 0.0
    %185 = vmatpush1.msra.mxu0 0.0
    %186 = vmatprep.subr.mxu0 0.0
    %187 = vmatpush1.msra.mxu0 0.0
    %188 = vmatprep.subr.mxu0 0.0
    %189 = vmatpush1.msra.mxu0 0.0
    %190 = vmatprep.subr.mxu0 0.0
    %191 = vmatpush1.msra.mxu0 0.0
    %192 = vmatprep.subr.mxu0 0.0
    %193 = vmatpush1.msra.mxu0 0.0
    %194 = vmatprep.subr.mxu0 0.0
    %195 = vmatpush1.msra.mxu0 0.0
    %196 = vmatprep.subr.mxu0 0.0
    %197 = vmatpush1.msra.mxu0 0.0
    %198 = vmatprep.subr.mxu0 0.0
    %199 = vmatpush1.msra.mxu0 0.0
    %200 = vmatprep.subr.mxu0 0.0
    %201 = vmatpush1.msra.mxu0 0.0
    %202 = vmatprep.subr.mxu0 0.0
    %203 = vmatpush1.msra.mxu0 0.0
    %204 = vmatprep.subr.mxu0 0.0
    %205 = vmatpush1.msra.mxu0 0.0
    %206 = vmatprep.subr.mxu0 0.0
    %207 = vmatpush1.msra.mxu0 0.0
    %208 = vmatprep.subr.mxu0 0.0
    %209 = vmatpush1.msra.mxu0 0.0
    %210 = vmatprep.subr.mxu0 0.0
    %211 = vmatpush1.msra.mxu0 0.0
    %212 = vmatprep.subr.mxu0 0.0
    %213 = vmatpush1.msra.mxu0 0.0
    %214 = vmatprep.mubr.f32.mxu0 0.0
    %215 = vmatmul.mubr.f32.gmra.mrb[0].mxu0 %v128
    %v216 = vpop.f32.mrb[0].mxu0
    %v217 = vadd.f32 %v149, %v216
    %v218 = vpop.f32.mrb[0].mxu0
    %219 = vmatprep.mubr.f32.mxu0 0.0
    %220 = vmatmul.mubr.f32.gmra.mrb[0].mxu0 %v129
    %v221 = vpop.f32.mrb[0].mxu0
    %v222 = vadd.f32 %v149, %v221
    %v223 = vpop.f32.mrb[0].mxu0
    %224 = vdwg.mxu0
    %v225 = vlaneseq
    %v226 = vshrl.u32 %v225, 7
    %v227 = vsub.s32 2, %v226
    %v228 = vrot.slane %v27, %v227
    %vm229 = vcmp.gt.f32.partialorder %v228, 0.5
    %vm230 = vcmp.gt.f32.partialorder %v217, 0.0
    %vm231 = vcmp.gt.f32.partialorder %v222, 0.0
    %v232 = vmul.f32 %v217, 0.01
    %v233 = vmul.f32 %v222, 0.01
    %v234 = vsel %vm230, %v217, %v232
    %v235 = vsel %vm231, %v222, %v233
    %v236 = vsel %vm229, %v234, %v217
    %v237 = vsel %vm229, %v235, %v222
    %v238 = vlaneseq
    %v239 = vshrl.u32 %v238, 7
    %v240 = vsub.s32 3, %v239
    %v241 = vrot.slane %v27, %v240
    %v242 = vmul.f32 %v236, %v241
    %v243 = vmul.f32 %v237, %v241
    %v244 = vlaneseq
    %v245 = vshrl.u32 %v244, 7
    %v246 = vsub.s32 4, %v245
    %v247 = vrot.slane %v27, %v246
    %v248 = vadd.f32 %v242, %v247
    %v249 = vadd.f32 %v243, %v247
    %v250 = vld [vmem:[#allocation2 + $0x100] sm:$0xff]
    %v251 = vld [vmem:[#allocation2 + $0x108] sm:$0xff]
    %v252 = vld [vmem:[#allocation2 + $0x110] sm:$0xff]
    %v253 = vld [vmem:[#allocation2 + $0x118] sm:$0xff]
    %v254 = vld [vmem:[#allocation2 + $0x120] sm:$0xff]
    %v255 = vld [vmem:[#allocation2 + $0x128] sm:$0xff]
    %v256 = vld [vmem:[#allocation2 + $0x130] sm:$0xff]
    %v257 = vld [vmem:[#allocation2 + $0x138] sm:$0xff]
    %v258 = vld [vmem:[#allocation2 + $0x140] sm:$0xff]
    %v259 = vld [vmem:[#allocation2 + $0x148] sm:$0xff]
    %v260 = vld [vmem:[#allocation2 + $0x150] sm:$0xff]
    %v261 = vld [vmem:[#allocation2 + $0x158] sm:$0xff]
    %v262 = vld [vmem:[#allocation2 + $0x160] sm:$0xff]
    %v263 = vld [vmem:[#allocation2 + $0x168] sm:$0xff]
    %v264 = vld [vmem:[#allocation2 + $0x170] sm:$0xff]
    %v265 = vld [vmem:[#allocation2 + $0x178] sm:$0xff]
    %v266 = vlaneseq
    %v267 = vshrl.u32 %v266, 7
    %v268 = vsub.s32 5, %v267
    %v269 = vrot.slane %v27, %v268
    %270 = vmatprep.subr.mxu0 0.0
    %271 = vmatpush1.msra.mxu0 %v250
    %272 = vmatprep.subr.mxu0 0.0
    %273 = vmatpush1.msra.mxu0 %v251
    %274 = vmatprep.subr.mxu0 0.0
    %275 = vmatpush1.msra.mxu0 %v252
    %276 = vmatprep.subr.mxu0 0.0
    %277 = vmatpush1.msra.mxu0 %v253
    %278 = vmatprep.subr.mxu0 0.0
    %279 = vmatpush1.msra.mxu0 %v254
    %280 = vmatprep.subr.mxu0 0.0
    %281 = vmatpush1.msra.mxu0 %v255
    %282 = vmatprep.subr.mxu0 0.0
    %283 = vmatpush1.msra.mxu0 %v256
    %284 = vmatprep.subr.mxu0 0.0
    %285 = vmatpush1.msra.mxu0 %v257
    %286 = vmatprep.subr.mxu0 0.0
    %287 = vmatpush1.msra.mxu0 %v258
    %288 = vmatprep.subr.mxu0 0.0
    %289 = vmatpush1.msra.mxu0 %v259
    %290 = vmatprep.subr.mxu0 0.0
    %291 = vmatpush1.msra.mxu0 %v260
    %292 = vmatprep.subr.mxu0 0.0
    %293 = vmatpush1.msra.mxu0 %v261
    %294 = vmatprep.subr.mxu0 0.0
    %295 = vmatpush1.msra.mxu0 %v262
    %296 = vmatprep.subr.mxu0 0.0
    %297 = vmatpush1.msra.mxu0 %v263
    %298 = vmatprep.subr.mxu0 0.0
    %299 = vmatpush1.msra.mxu0 %v264
    %300 = vmatprep.subr.mxu0 0.0
    %301 = vmatpush1.msra.mxu0 %v265
    %302 = vmatprep.subr.mxu0 0.0
    %303 = vmatpush1.msra.mxu0 0.0
    %304 = vmatprep.subr.mxu0 0.0
    %305 = vmatpush1.msra.mxu0 0.0
    %306 = vmatprep.subr.mxu0 0.0
    %307 = vmatpush1.msra.mxu0 0.0
    %308 = vmatprep.subr.mxu0 0.0
    %309 = vmatpush1.msra.mxu0 0.0
    %310 = vmatprep.subr.mxu0 0.0
    %311 = vmatpush1.msra.mxu0 0.0
    %312 = vmatprep.subr.mxu0 0.0
    %313 = vmatpush1.msra.mxu0 0.0
    %314 = vmatprep.subr.mxu0 0.0
    %315 = vmatpush1.msra.mxu0 0.0
    %316 = vmatprep.subr.mxu0 0.0
    %317 = vmatpush1.msra.mxu0 0.0
    %318 = vmatprep.subr.mxu0 0.0
    %319 = vmatpush1.msra.mxu0 0.0
    %320 = vmatprep.subr.mxu0 0.0
    %321 = vmatpush1.msra.mxu0 0.0
    %322 = vmatprep.subr.mxu0 0.0
    %323 = vmatpush1.msra.mxu0 0.0
    %324 = vmatprep.subr.mxu0 0.0
    %325 = vmatpush1.msra.mxu0 0.0
    %326 = vmatprep.subr.mxu0 0.0
    %327 = vmatpush1.msra.mxu0 0.0
    %328 = vmatprep.subr.mxu0 0.0
    %329 = vmatpush1.msra.mxu0 0.0
    %330 = vmatprep.subr.mxu0 0.0
    %331 = vmatpush1.msra.mxu0 0.0
    %332 = vmatprep.subr.mxu0 0.0
    %333 = vmatpush1.msra.mxu0 0.0
    %334 = vmatprep.mubr.f32.mxu0 0.0
    %335 = vmatmul.mubr.f32.gmra.mrb[0].mxu0 %v248
    %v336 = vpop.f32.mrb[0].mxu0
    %v337 = vadd.f32 %v269, %v336
    %v338 = vpop.f32.mrb[0].mxu0
    %339 = vmatprep.mubr.f32.mxu0 0.0
    %340 = vmatmul.mubr.f32.gmra.mrb[0].mxu0 %v249
    %v341 = vpop.f32.mrb[0].mxu0
    %v342 = vadd.f32 %v269, %v341
    %v343 = vpop.f32.mrb[0].mxu0
    %344 = vdwg.mxu0
    %v345 = vlaneseq
    %v346 = vshrl.u32 %v345, 7
    %v347 = vsub.s32 6, %v346
    %v348 = vrot.slane %v27, %v347
    %vm349 = vcmp.gt.f32.partialorder %v348, 0.5
    %vm350 = vcmp.gt.f32.partialorder %v337, 0.0
    %vm351 = vcmp.gt.f32.partialorder %v342, 0.0
    %v352 = vmul.f32 %v337, 0.01
    %v353 = vmul.f32 %v342, 0.01
    %v354 = vsel %vm350, %v337, %v352
    %v355 = vsel %vm351, %v342, %v353
    %v356 = vsel %vm349, %v354, %v337
    %v357 = vsel %vm349, %v355, %v342
    %v358 = vlaneseq
    %v359 = vshrl.u32 %v358, 7
    %v360 = vsub.s32 7, %v359
    %v361 = vrot.slane %v27, %v360
    %v362 = vmul.f32 %v356, %v361
    %v363 = vmul.f32 %v357, %v361
    %v364 = vlaneseq
    %v365 = vshrl.u32 %v364, 7
    %v366 = vsub.s32 0, %v365
    %v367 = vrot.slane %v28, %v366
    %v368 = vadd.f32 %v362, %v367
    %v369 = vadd.f32 %v363, %v367
    %v370 = vld [vmem:[#allocation2 + $0x180] sm:$0xff]
    %v371 = vld [vmem:[#allocation2 + $0x188] sm:$0xff]
    %v372 = vld [vmem:[#allocation2 + $0x190] sm:$0xff]
    %v373 = vld [vmem:[#allocation2 + $0x198] sm:$0xff]
    %v374 = vld [vmem:[#allocation2 + $0x1a0] sm:$0xff]
    %v375 = vld [vmem:[#allocation2 + $0x1a8] sm:$0xff]
    %v376 = vld [vmem:[#allocation2 + $0x1b0] sm:$0xff]
    %v377 = vld [vmem:[#allocation2 + $0x1b8] sm:$0xff]
    %v378 = vld [vmem:[#allocation2 + $0x1c0] sm:$0xff]
    %v379 = vld [vmem:[#allocation2 + $0x1c8] sm:$0xff]
    %v380 = vld [vmem:[#allocation2 + $0x1d0] sm:$0xff]
    %v381 = vld [vmem:[#allocation2 + $0x1d8] sm:$0xff]
    %v382 = vld [vmem:[#allocation2 + $0x1e0] sm:$0xff]
    %v383 = vld [vmem:[#allocation2 + $0x1e8] sm:$0xff]
    %v384 = vld [vmem:[#allocation2 + $0x1f0] sm:$0xff]
    %v385 = vld [vmem:[#allocation2 + $0x1f8] sm:$0xff]
    %386 = vmatprep.subr.mxu0 0.0
    %387 = vmatpush1.msra.mxu0 %v370
    %388 = vmatprep.subr.mxu0 0.0
    %389 = vmatpush1.msra.mxu0 %v371
    %390 = vmatprep.subr.mxu0 0.0
    %391 = vmatpush1.msra.mxu0 %v372
    %392 = vmatprep.subr.mxu0 0.0
    %393 = vmatpush1.msra.mxu0 %v373
    %394 = vmatprep.subr.mxu0 0.0
    %395 = vmatpush1.msra.mxu0 %v374
    %396 = vmatprep.subr.mxu0 0.0
    %397 = vmatpush1.msra.mxu0 %v375
    %398 = vmatprep.subr.mxu0 0.0
    %399 = vmatpush1.msra.mxu0 %v376
    %400 = vmatprep.subr.mxu0 0.0
    %401 = vmatpush1.msra.mxu0 %v377
    %402 = vmatprep.subr.mxu0 0.0
    %403 = vmatpush1.msra.mxu0 %v378
    %404 = vmatprep.subr.mxu0 0.0
    %405 = vmatpush1.msra.mxu0 %v379
    %406 = vmatprep.subr.mxu0 0.0
    %407 = vmatpush1.msra.mxu0 %v380
    %408 = vmatprep.subr.mxu0 0.0
    %409 = vmatpush1.msra.mxu0 %v381
    %410 = vmatprep.subr.mxu0 0.0
    %411 = vmatpush1.msra.mxu0 %v382
    %412 = vmatprep.subr.mxu0 0.0
    %413 = vmatpush1.msra.mxu0 %v383
    %414 = vmatprep.subr.mxu0 0.0
    %415 = vmatpush1.msra.mxu0 %v384
    %416 = vmatprep.subr.mxu0 0.0
    %417 = vmatpush1.msra.mxu0 %v385
    %418 = vmatprep.subr.mxu0 0.0
    %419 = vmatpush1.msra.mxu0 0.0
    %420 = vmatprep.subr.mxu0 0.0
    %421 = vmatpush1.msra.mxu0 0.0
    %422 = vmatprep.subr.mxu0 0.0
    %423 = vmatpush1.msra.mxu0 0.0
    %424 = vmatprep.subr.mxu0 0.0
    %425 = vmatpush1.msra.mxu0 0.0
    %426 = vmatprep.subr.mxu0 0.0
    %427 = vmatpush1.msra.mxu0 0.0
    %428 = vmatprep.subr.mxu0 0.0
    %429 = vmatpush1.msra.mxu0 0.0
    %430 = vmatprep.subr.mxu0 0.0
    %431 = vmatpush1.msra.mxu0 0.0
    %432 = vmatprep.subr.mxu0 0.0
    %433 = vmatpush1.msra.mxu0 0.0
    %434 = vmatprep.subr.mxu0 0.0
    %435 = vmatpush1.msra.mxu0 0.0
    %436 = vmatprep.subr.mxu0 0.0
    %437 = vmatpush1.msra.mxu0 0.0
    %438 = vmatprep.subr.mxu0 0.0
    %439 = vmatpush1.msra.mxu0 0.0
    %440 = vmatprep.subr.mxu0 0.0
    %441 = vmatpush1.msra.mxu0 0.0
    %442 = vmatprep.subr.mxu0 0.0
    %443 = vmatpush1.msra.mxu0 0.0
    %444 = vmatprep.subr.mxu0 0.0
    %445 = vmatpush1.msra.mxu0 0.0
    %446 = vmatprep.subr.mxu0 0.0
    %447 = vmatpush1.msra.mxu0 0.0
    %448 = vmatprep.subr.mxu0 0.0
    %449 = vmatpush1.msra.mxu0 0.0
    %450 = vmatprep.mubr.f32.mxu0 0.0
    %451 = vmatmul.mubr.f32.gmra.mrb[0].mxu0 %v368
    %v452 = vpop.f32.mrb[0].mxu0
    %v453 = vadd.f32 0.0, %v452
    %v454 = vpop.f32.mrb[0].mxu0
    %455 = vmatprep.mubr.f32.mxu0 0.0
    %456 = vmatmul.mubr.f32.gmra.mrb[0].mxu0 %v369
    %v457 = vpop.f32.mrb[0].mxu0
    %v458 = vadd.f32 0.0, %v457
    %v459 = vpop.f32.mrb[0].mxu0
    %460 = vdwg.mxu0
    %v461 = vlaneseq
    %v462 = vshrl.u32 %v461, 7
    %v463 = vsub.s32 1, %v462
    %v464 = vrot.slane %v28, %v463
    %v465 = vadd.f32 %v453, %v464
    %v466 = vadd.f32 %v458, %v464
    %vm467 = vcmp.gt.f32.partialorder %v465, 0.0
    %vm468 = vcmp.gt.f32.partialorder %v466, 0.0
    %v469 = vmul.f32 %v465, 0.01
    %v470 = vmul.f32 %v466, 0.01
    %v471 = vsel %vm467, %v465, %v469
    %v472 = vsel %vm468, %v466, %v470
    %v473 = vlaneseq
    %v474 = vshrl.u32 %v473, 7
    %v475 = vsub.s32 2, %v474
    %v476 = vrot.slane %v28, %v475
    %v477 = vmul.f32 %v471, %v476
    %v478 = vmul.f32 %v472, %v476
    %v479 = vlaneseq
    %v480 = vshrl.u32 %v479, 7
    %v481 = vsub.s32 3, %v480
    %v482 = vrot.slane %v28, %v481
    %v483 = vadd.f32 %v477, %v482
    %v484 = vadd.f32 %v478, %v482
    %487 = vrot.lane.b32.xlu0 %v25, 64
    %v488 = vpop.permute.xlu0 %487
    %489 = vrot.lane.b32.xlu0 %v26, 64
    %v490 = vpop.permute.xlu0 %489
    %v493 = vadd.f32 %v483, %v488
    %v494 = vadd.f32 %v484, %v490
    %495 = vset.pattern.permute.xlu0 50
    %496 = vperm.xlu0 %495, %v25
    %v497 = vpop.permute.xlu0 %496
    %499 = vset.pattern.permute.xlu0 50
    %500 = vperm.xlu0 %499, %v26
    %v501 = vpop.permute.xlu0 %500
    %v503 = vlaneseq
    %v504 = vshrl.u32 %v503, 7
    %v505 = vsub.s32 4, %v504
    %v506 = vrot.slane %v28, %v505
    %vm507 = vcmp.gt.f32.partialorder %v497, 0.5
    %vm508 = vcmp.gt.f32.partialorder %v501, 0.5
    %v509 = vsel %vm507, %v506, %v493
    %v510 = vsel %vm508, %v506, %v494
    %vm511 = vcmask 523264
    %512 = vst.msk [vmem:[%s2] sm:$0xff] %vm511, %v509
    %vm513 = vcmask 517120
    %514 = vst.msk [vmem:[%s2 + $0x8] sm:$0x3] %vm513, %v510
    // Predicated region
    $region14: #{window_embedding_forward.1} parent=1 // pred_check
      _
    $region15: #{window_embedding_forward.1} parent=1 // pred_check_branch
      %516 = sbr.rel (0) target = $region17
    $region16: #{window_embedding_forward.1} parent=1 // pred_region
      _
    $region17: #{window_embedding_forward.1} parent=1 // pred_fallthru
      _
    // Predicated region
    $region18: #{window_embedding_forward.1} parent=1 // pred_check
      _
    $region19: #{window_embedding_forward.1} parent=1 // pred_check_branch
      %518 = sbr.rel (0) target = $region21
    $region20: #{window_embedding_forward.1} parent=1 // pred_region
      _
    $region21: #{window_embedding_forward.1} parent=1 // pred_fallthru
      _
    %519 = vsyncpa [#allocation3], 1

</llo_original>
